<compile_context>
chip_gen: v6e
topology: v6e:2x2x1
jax: 0.10.0
libtpu: 0.0.40
codegen_flags: <defaults>
</compile_context>

<pallas_src>
import functools

import jax
import jax.numpy as jnp
from jax import lax
from jax.experimental import pallas as pl
from jax.experimental.pallas import tpu as pltpu


def _conv_bn_kernel(x_ref, w_ref, b_ref, o_ref, *,
                    kh, kw, stride, dilation, th, w_out, c_in):
    """One (batch-element, H-tile) block of conv + folded BN (inference).

    x_ref: (C_in, H_p, W_p)    padded NCHW image of batch element n (bf16)
    w_ref: (C_out, K)          K = kh*kw*C_in, BN scale folded in (bf16)
    b_ref: (C_out, 1)          f32 folded BN bias (beta - mean * scale)
    o_ref: (C_out, th*W_out)   f32 output block (already NCHW-ordered, lane-dense)
    """
    t = pl.program_id(1)
    tile_m = th * w_out
    th_span = (th - 1) * stride + (kh - 1) * dilation + 1
    h_base = pl.multiple_of(t * (th * stride), th * stride)

    # Single load of the input rows this tile needs (tile rows + halo).
    band = x_ref[:, pl.ds(h_base, th_span), :]           # (C_in, th_span, W_p)

    # Build the fused K = kh*kw*C_in slab once per grid step and contract it
    # in a single MXU matmul (instead of kh*kw K=C_in dots each doing a
    # read-modify-write of a (tile_m, C_out) f32 VMEM accumulator).
    wins = []
    for i in range(kh):
        for j in range(kw):
            h0 = i * dilation
            w0 = j * dilation
            # TODO(synk): the stride > 1 (strided lax.slice) path is not
            # exercised by the harness below; validate in interpret mode
            # before relying on it.
            wins.append(lax.slice(
                band,
                (0, h0, w0),
                (c_in, h0 + (th - 1) * stride + 1,
                 w0 + (w_out - 1) * stride + 1),
                (1, stride, stride)))                    # (C_in, th, W_out)
    slab = jnp.concatenate(wins, axis=0).reshape(kh * kw * c_in, tile_m)

    # (C_out, K) @ (K, tile_m) -> (C_out, tile_m): channel-major result, no
    # transpose needed; f32 accumulation on the MXU.
    acc = jnp.dot(w_ref[...], slab, preferred_element_type=jnp.float32)
    o_ref[...] = (acc + b_ref[...]).astype(o_ref.dtype)  # f32 epilogue


def _pick_tile_rows(h_out, w_out, target=8192):
    """Pick th | H_out so the output block's lane dim (th*W_out) is either the
    full extent or a multiple of 128 (unmasked, lane-dense stores), as large
    as possible under `target` elements (amortizes per-step grid overhead)."""
    if h_out * w_out <= target:
        return h_out
    best = None
    for th in range(1, h_out + 1):
        tile_m = th * w_out
        if h_out % th == 0 and tile_m % 128 == 0 and tile_m <= target:
            best = th
    # Fall back to the full extent (always a legal block shape).
    return best if best is not None else h_out


@functools.partial(
    jax.jit,
    static_argnames=("stride", "padding", "dilation", "eps", "compute_dtype"))
def basic_conv2d(x_nchw, weight, gamma, beta, running_mean, running_var,
                 *, stride=1, padding=0, dilation=1, eps=1e-5,
                 compute_dtype=jnp.bfloat16):
    """Forward of BasicConv2d: bn(conv(x)).  Input/output NCHW (PyTorch).

    NOTE: BatchNorm uses running statistics (inference semantics)."""
    N, C_in, H, W = x_nchw.shape
    C_out, C_in_w, kh, kw = weight.shape
    assert C_in_w == C_in

    H_out = (H + 2 * padding - dilation * (kh - 1) - 1) // stride + 1
    W_out = (W + 2 * padding - dilation * (kw - 1) - 1) // stride + 1
    H_p, W_p = H + 2 * padding, W + 2 * padding
    K = kh * kw * C_in

    # NCHW end-to-end: one pad pass, no activation layout transpose in XLA.
    x_pad = jnp.pad(x_nchw.astype(compute_dtype),
                    ((0, 0), (0, 0), (padding, padding), (padding, padding)))

    # Fold BN (running stats) into per-channel scale/bias; fold the scale into
    # the weights so the kernel only adds a bias on the (C_out, tile_m) result.
    scale = gamma.astype(jnp.float32) / jnp.sqrt(
        running_var.astype(jnp.float32) + eps)
    bias = (beta.astype(jnp.float32)
            - running_mean.astype(jnp.float32) * scale).reshape(C_out, 1)

    # (C_out, C_in, kh, kw) -> (C_out, kh, kw, C_in) -> (C_out, K); the K
    # ordering (tap-major, channel-minor) matches the in-kernel slab.
    w_fold = weight.astype(jnp.float32) * scale[:, None, None, None]
    w_fused = jnp.transpose(w_fold, (0, 2, 3, 1)).reshape(C_out, K)
    w_fused = w_fused.astype(compute_dtype)

    th = _pick_tile_rows(H_out, W_out)
    n_h_tiles = H_out // th
    tile_m = th * W_out

    kernel = functools.partial(
        _conv_bn_kernel, kh=kh, kw=kw, stride=stride, dilation=dilation,
        th=th, w_out=W_out, c_in=C_in)

    # Rough VMEM budget (lane/sublane padded, double-buffered) so v7x's 64 MiB
    # is respected; clamped to a range that is safe on all generations.
    _pad8 = lambda n: -(-n // 8) * 8
    _pad128 = lambda n: -(-n // 128) * 128
    x_blk = C_in * _pad8(H_p) * _pad128(W_p) * 2
    o_blk = _pad8(C_out) * _pad128(tile_m) * 4
    w_blk = _pad8(C_out) * _pad128(K) * 2
    slab_blk = _pad8(K) * _pad128(tile_m) * 2
    est = 2 * x_blk + 2 * o_blk + 2 * w_blk + 4 * slab_blk + (4 << 20)
    vmem_limit = int(min(48 << 20, max(32 << 20, est)))
    # TODO(synk): for large H*W, replace the full-image x BlockSpec below with
    # an H-window (halo) block so VMEM no longer scales with image size.

    flops = 2 * N * H_out * W_out * C_out * K
    bytes_accessed = (x_pad.size * x_pad.dtype.itemsize
                      + w_fused.size * w_fused.dtype.itemsize
                      + bias.size * 4
                      + N * C_out * H_out * W_out * 4)

    out_flat = pl.pallas_call(
        kernel,
        out_shape=jax.ShapeDtypeStruct((N, C_out, H_out * W_out), jnp.float32),
        grid_spec=pltpu.PrefetchScalarGridSpec(
            num_scalar_prefetch=0,
            grid=(N, n_h_tiles),
            in_specs=[
                # Full padded image of batch element n; block index constant
                # across the inner H-tile axis -> stays resident in VMEM.
                pl.BlockSpec((None, C_in, H_p, W_p), lambda n, t: (n, 0, 0, 0)),
                pl.BlockSpec((C_out, K), lambda n, t: (0, 0)),
                pl.BlockSpec((C_out, 1), lambda n, t: (0, 0)),
            ],
            out_specs=pl.BlockSpec((None, C_out, tile_m),
                                   lambda n, t: (n, 0, t)),
        ),
        compiler_params=pltpu.CompilerParams(
            dimension_semantics=("parallel", "parallel"),
            vmem_limit_bytes=vmem_limit),
        cost_estimate=pl.CostEstimate(
            flops=flops, transcendentals=0, bytes_accessed=bytes_accessed),
    )(x_pad, w_fused, bias)

    # Output is already (N, C_out, H_out*W_out) == NCHW-flattened: reshape only.
    return out_flat.reshape(N, C_out, H_out, W_out)


def _reference(x_nchw, weight, gamma, beta, mean, var,
               stride, padding, dilation, eps=1e-5):
    y = lax.conv_general_dilated(
        x_nchw.astype(jnp.float32), weight.astype(jnp.float32),
        window_strides=(stride, stride),
        padding=[(padding, padding), (padding, padding)],
        rhs_dilation=(dilation, dilation),
        dimension_numbers=("NCHW", "OIHW", "NCHW"),
        precision=lax.Precision.HIGHEST)
    s = gamma / jnp.sqrt(var + eps)
    b = beta - mean * s
    return y * s[None, :, None, None] + b[None, :, None, None]


if __name__ == "__main__":
    # module config: BasicConv2d(in_planes=4, out_planes=8, kernel_size=3,
    #                            stride=1, padding=1, dilation=1)
    N, C_in, H, W = 2, 4, 16, 16
    C_out, kh, kw = 8, 3, 3
    stride, padding, dilation = 1, 1, 1

    key = jax.random.PRNGKey(0)
    kx, kw_, kg, kb, km, kv = jax.random.split(key, 6)
    x = jax.random.normal(kx, (N, C_in, H, W), dtype=jnp.float32)
    weight = jax.random.normal(kw_, (C_out, C_in, kh, kw), dtype=jnp.float32) * 0.1
    gamma = jax.random.normal(kg, (C_out,), dtype=jnp.float32) * 0.1 + 1.0
    beta = jax.random.normal(kb, (C_out,), dtype=jnp.float32) * 0.1
    running_mean = jax.random.normal(km, (C_out,), dtype=jnp.float32) * 0.1
    running_var = jax.random.uniform(kv, (C_out,), dtype=jnp.float32,
                                     minval=0.5, maxval=1.5)

    out = basic_conv2d(x, weight, gamma, beta, running_mean, running_var,
                       stride=stride, padding=padding, dilation=dilation)
    out = jax.block_until_ready(out)

    ref = _reference(x, weight, gamma, beta, running_mean, running_var,
                     stride, padding, dilation)
    assert out.shape == (N, C_out, H, W), out.shape
    # bf16 MXU operands with f32 accumulation -> relaxed tolerance.
    assert jnp.allclose(out, ref, atol=5e-2, rtol=5e-2), \
        float(jnp.max(jnp.abs(out - ref)))
    print("KERNEL_OK")
</pallas_src>

<mosaic_0001>
module attributes {stable_mosaic.version = 11 : i64} {
  func.func @_conv_bn_kernel(%arg0: i32, %arg1: i32, %arg2: memref<1x4x18x18xbf16, #tpu.memory_space<vmem>>, %arg3: memref<8x36xbf16, #tpu.memory_space<vmem>>, %arg4: memref<8x1xf32, #tpu.memory_space<vmem>>, %arg5: memref<1x8x256xf32, #tpu.memory_space<vmem>>) attributes {dimension_semantics = [#tpu.dimension_semantics<parallel>, #tpu.dimension_semantics<parallel>], iteration_bounds = array<i64: 2, 1>, scalar_prefetch = 0 : i64, scratch_operands = 0 : i64, tpu.core_type = #tpu.core_type<tc>, window_params = [{transform_indices = @transform_0, window_bounds = array<i64: 1, 4, 18, 18>}, {pipeline_mode = #tpu.pipeline_mode<synchronous>, transform_indices = @transform_1, window_bounds = array<i64: 8, 36>}, {pipeline_mode = #tpu.pipeline_mode<synchronous>, transform_indices = @transform_2, window_bounds = array<i64: 8, 1>}, {transform_indices = @transform_3, window_bounds = array<i64: 1, 8, 256>}]} {
    %c16_i32 = arith.constant 16 : i32
    %0 = arith.muli %arg1, %c16_i32 : i32
    %1 = tpu.assume_multiple %0, 16 : i32
    %c0 = arith.constant 0 : index
    %c0_0 = arith.constant 0 : index
    %2 = arith.index_cast %1 : i32 to index
    %c0_1 = arith.constant 0 : index
    %3 = vector.load %arg2[%c0, %c0_0, %2, %c0_1] : memref<1x4x18x18xbf16, #tpu.memory_space<vmem>>, vector<1x4x18x18xbf16>
    %4 = vector.shape_cast %3 : vector<1x4x18x18xbf16> to vector<4x18x18xbf16>
    %5 = vector.extract_strided_slice %4 {offsets = [0, 0, 0], sizes = [4, 16, 16], strides = [1, 1, 1]} : vector<4x18x18xbf16> to vector<4x16x16xbf16>
    %6 = vector.extract_strided_slice %4 {offsets = [0, 0, 1], sizes = [4, 16, 16], strides = [1, 1, 1]} : vector<4x18x18xbf16> to vector<4x16x16xbf16>
    %7 = vector.extract_strided_slice %4 {offsets = [0, 0, 2], sizes = [4, 16, 16], strides = [1, 1, 1]} : vector<4x18x18xbf16> to vector<4x16x16xbf16>
    %8 = vector.extract_strided_slice %4 {offsets = [0, 1, 0], sizes = [4, 16, 16], strides = [1, 1, 1]} : vector<4x18x18xbf16> to vector<4x16x16xbf16>
    %9 = vector.extract_strided_slice %4 {offsets = [0, 1, 1], sizes = [4, 16, 16], strides = [1, 1, 1]} : vector<4x18x18xbf16> to vector<4x16x16xbf16>
    %10 = vector.extract_strided_slice %4 {offsets = [0, 1, 2], sizes = [4, 16, 16], strides = [1, 1, 1]} : vector<4x18x18xbf16> to vector<4x16x16xbf16>
    %11 = vector.extract_strided_slice %4 {offsets = [0, 2, 0], sizes = [4, 16, 16], strides = [1, 1, 1]} : vector<4x18x18xbf16> to vector<4x16x16xbf16>
    %12 = vector.extract_strided_slice %4 {offsets = [0, 2, 1], sizes = [4, 16, 16], strides = [1, 1, 1]} : vector<4x18x18xbf16> to vector<4x16x16xbf16>
    %13 = vector.extract_strided_slice %4 {offsets = [0, 2, 2], sizes = [4, 16, 16], strides = [1, 1, 1]} : vector<4x18x18xbf16> to vector<4x16x16xbf16>
    %14 = tpu.concatenate %5, %6, %7, %8, %9, %10, %11, %12, %13 in 0 : vector<4x16x16xbf16>, vector<4x16x16xbf16>, vector<4x16x16xbf16>, vector<4x16x16xbf16>, vector<4x16x16xbf16>, vector<4x16x16xbf16>, vector<4x16x16xbf16>, vector<4x16x16xbf16>, vector<4x16x16xbf16> -> vector<36x16x16xbf16>
    %15 = vector.shape_cast %14 : vector<36x16x16xbf16> to vector<36x256xbf16>
    %c0_2 = arith.constant 0 : index
    %c0_3 = arith.constant 0 : index
    %16 = vector.load %arg3[%c0_2, %c0_3] : memref<8x36xbf16, #tpu.memory_space<vmem>>, vector<8x36xbf16>
    %cst = arith.constant dense<0.000000e+00> : vector<8x256xf32>
    %17 = tpu.matmul %16, %15, %cst {dimension_numbers = #tpu.dot_dimension_numbers<[1], [0], [0], [1], [0, 0, 1, 1], [], []>} : vector<8x36xbf16>, vector<36x256xbf16>, vector<8x256xf32> -> vector<8x256xf32>
    %c0_4 = arith.constant 0 : index
    %c0_5 = arith.constant 0 : index
    %18 = vector.load %arg4[%c0_4, %c0_5] : memref<8x1xf32, #tpu.memory_space<vmem>>, vector<8x1xf32>
    %19 = vector.broadcast %18 : vector<8x1xf32> to vector<8x256xf32>
    %20 = arith.addf %17, %19 : vector<8x256xf32>
    %c0_6 = arith.constant 0 : index
    %c0_7 = arith.constant 0 : index
    %c0_8 = arith.constant 0 : index
    %21 = vector.load %arg5[%c0_6, %c0_7, %c0_8] : memref<1x8x256xf32, #tpu.memory_space<vmem>>, vector<1x8x256xf32>
    %22 = vector.shape_cast %21 : vector<1x8x256xf32> to vector<8x256xf32>
    %23 = vector.shape_cast %20 : vector<8x256xf32> to vector<1x8x256xf32>
    tpu.vector_store %arg5[%c0_6, %c0_7, %c0_8], %23 {strides = array<i32>} : memref<1x8x256xf32, #tpu.memory_space<vmem>>, vector<1x8x256xf32>,
    return
  }
  func.func @transform_0(%arg0: i32, %arg1: i32) -> (i32, i32, i32, i32) {
    %c0_i32 = arith.constant 0 : i32
    %c0_i32_0 = arith.constant 0 : i32
    %c0_i32_1 = arith.constant 0 : i32
    %c0_i32_2 = arith.constant 0 : i32
    return %arg0, %c0_i32, %c0_i32_0, %c0_i32_1 : i32, i32, i32, i32
  }
  func.func @transform_1(%arg0: i32, %arg1: i32) -> (i32, i32) {
    %c0_i32 = arith.constant 0 : i32
    %c0_i32_0 = arith.constant 0 : i32
    %c0_i32_1 = arith.constant 0 : i32
    return %c0_i32, %c0_i32_0 : i32, i32
  }
  func.func @transform_2(%arg0: i32, %arg1: i32) -> (i32, i32) {
    %c0_i32 = arith.constant 0 : i32
    %c0_i32_0 = arith.constant 0 : i32
    %c0_i32_1 = arith.constant 0 : i32
    return %c0_i32, %c0_i32_0 : i32, i32
  }
  func.func @transform_3(%arg0: i32, %arg1: i32) -> (i32, i32, i32) {
    %c0_i32 = arith.constant 0 : i32
    %c0_i32_0 = arith.constant 0 : i32
    return %arg0, %c0_i32, %arg1 : i32, i32, i32
  }
}

</mosaic_0001>

<llo_original>
// kernel: basic_conv2d.1
$region0: #{basic_conv2d.1}
  #allocation0 [shape = 'u32[]', space=smem, size = 0x4, offset = 0x4, fixed_abs, tag = 'smem constant byte address 0x4 - core index']
  #allocation1 [shape = 'u32[144,128]{1,0:T(1,128)}', space=vmem, size = 0x12000, scoped, tag = 'internal scratch']
  %s0 = inlined_call_operand.vmem [shape: bf16[2,4,18,18], index: 0, kind: input, shape index: {}]
  %s1 = inlined_call_operand.vmem [shape: bf16[8,36], index: 1, kind: input, shape index: {}]
  %s2 = inlined_call_operand.vmem [shape: f32[8,1], index: 2, kind: input, shape index: {}]
  %s3 = inlined_call_operand.vmem [shape: f32[2,8,256], index: 3, kind: output, shape index: {}]
  %s4 = sld [smem:[#allocation0]]
  $region45: #{basic_conv2d.1} parent=0
    _
  %s6 = ssub.s32 1, %s4
  %s7 = scalar_select 0, %s6, %s4
  loop: start=0, step=1, limit=4
  $region2: #{basic_conv2d.1} parent=0 // loop_pre_header
    _
  $region3: #{basic_conv2d.1} parent=0 // loop_header
    %s9 = sphi 0, %s13
    %p10 = scmp.ge.s32.totalorder %s9, 4
    %s16 = sphi 0, %s28
    %s17 = sphi 0, %s24
    %s18 = sphi 0, %s16
    %s19 = sphi 0, %s17
    %s20 = sphi 0, %s18
    %s21 = sphi 0, %s19
    %s31 = sphi 0, %s33
    %s34 = sphi 0, %s31
    %s35 = sphi 0, %s34
    %s51 = sphi 0, %s35
    %s55 = sphi 0, %s55
    %s57 = sphi 0, %s55
    %s58 = sphi 0, %s57
    %s72 = sphi 0, %s58
    %s76 = sphi 0, %s76
    %s78 = sphi 0, %s76
    %s79 = sphi 0, %s78
    %s93 = sphi 0, %s79
    %s101 = sphi 0, %s103
    %s104 = sphi 0, %s101
    %s105 = sphi 0, %s104
    %s121 = sphi 0, %s105
  $region4: #{basic_conv2d.1} parent=0 // loop_header_branch
    %12 = sbr.rel (%p10) target = $region8
  $region5: #{basic_conv2d.1} parent=0 // loop_body
    %s14 = ssub.s32 %s9, 1
    %s15 = ssub.s32 %s9, 2
    %s22 = sadd.s32 1, %s17
    %p23 = scmp.ge.s32.totalorder %s22, 1
    %s24 = scalar_select %p23, 0, %s22
    %s25 = sadd.s32 1, %s16
    %s26 = scalar_select %p23, %s25, %s16
    %p27 = scmp.ge.s32.totalorder %s26, 2
    %s28 = scalar_select %p27, 0, %s26
    %s29 = ssub.s32 %s16, %s28
    %p30 = scmp.eq.s32.totalorder %s29, 0
    %s32 = sadd.s32 %s31, 1
    %s33 = scalar_select %p30, %s31, %s32
    %p36 = pneg %p30
    %p37 = scmp.eq.s32.totalorder %s9, 1
    %p38 = por %p36, %p37
    %p39 = scmp.ne.s32.totalorder %s31, %s34
    %p40 = scmp.eq.s32.totalorder %s9, 0
    %p41 = por %p39, %p40
    %p42 = scmp.ne.s32.totalorder %s31, %s34
    %p43 = scmp.eq.s32.totalorder %s14, 1
    %p44 = por %p42, %p43
    %p45 = scmp.ne.s32.totalorder %s34, %s35
    %p46 = scmp.eq.s32.totalorder %s14, 0
    %p47 = por %p45, %p46
    %p48 = scmp.ne.s32.totalorder %s34, %s35
    %p49 = scmp.eq.s32.totalorder %s15, 1
    %p50 = por %p48, %p49
    %p52 = scmp.ne.s32.totalorder %s35, %s51
    %p53 = scmp.eq.s32.totalorder %s15, 0
    %p54 = por %p52, %p53
    %s56 = sadd.s32 %s55, 1
    %p59 = scmp.eq.s32.totalorder %s9, 1
    %p60 = scmp.ne.s32.totalorder %s55, %s57
    %p61 = scmp.eq.s32.totalorder %s9, 0
    %p62 = por %p60, %p61
    %p63 = scmp.ne.s32.totalorder %s55, %s57
    %p64 = scmp.eq.s32.totalorder %s14, 1
    %p65 = por %p63, %p64
    %p66 = scmp.ne.s32.totalorder %s57, %s58
    %p67 = scmp.eq.s32.totalorder %s14, 0
    %p68 = por %p66, %p67
    %p69 = scmp.ne.s32.totalorder %s57, %s58
    %p70 = scmp.eq.s32.totalorder %s15, 1
    %p71 = por %p69, %p70
    %p73 = scmp.ne.s32.totalorder %s58, %s72
    %p74 = scmp.eq.s32.totalorder %s15, 0
    %p75 = por %p73, %p74
    %s77 = sadd.s32 %s76, 1
    %p80 = scmp.eq.s32.totalorder %s9, 1
    %p81 = scmp.ne.s32.totalorder %s76, %s78
    %p82 = scmp.eq.s32.totalorder %s9, 0
    %p83 = por %p81, %p82
    %p84 = scmp.ne.s32.totalorder %s76, %s78
    %p85 = scmp.eq.s32.totalorder %s14, 1
    %p86 = por %p84, %p85
    %p87 = scmp.ne.s32.totalorder %s78, %s79
    %p88 = scmp.eq.s32.totalorder %s14, 0
    %p89 = por %p87, %p88
    %p90 = scmp.ne.s32.totalorder %s78, %s79
    %p91 = scmp.eq.s32.totalorder %s15, 1
    %p92 = por %p90, %p91
    %p94 = scmp.ne.s32.totalorder %s79, %s93
    %p95 = scmp.eq.s32.totalorder %s15, 0
    %p96 = por %p94, %p95
    %s97 = ssub.s32 %s16, %s28
    %s98 = ssub.s32 %s17, %s24
    %s99 = sor.u32 %s97, %s98
    %p100 = scmp.eq.s32.totalorder %s99, 0
    %s102 = sadd.s32 %s101, 1
    %s103 = scalar_select %p100, %s101, %s102
    %p106 = pneg %p100
    %p107 = scmp.eq.s32.totalorder %s9, 1
    %p108 = por %p106, %p107
    %p109 = scmp.ne.s32.totalorder %s101, %s104
    %p110 = scmp.eq.s32.totalorder %s9, 0
    %p111 = por %p109, %p110
    %p112 = scmp.ne.s32.totalorder %s101, %s104
    %p113 = scmp.eq.s32.totalorder %s14, 1
    %p114 = por %p112, %p113
    %p115 = scmp.ne.s32.totalorder %s104, %s105
    %p116 = scmp.eq.s32.totalorder %s14, 0
    %p117 = por %p115, %p116
    %p118 = scmp.ne.s32.totalorder %s104, %s105
    %p119 = scmp.eq.s32.totalorder %s15, 1
    %p120 = por %p118, %p119
    %p122 = scmp.ne.s32.totalorder %s105, %s121
    %p123 = scmp.eq.s32.totalorder %s15, 0
    %p124 = por %p122, %p123
    %p125 = scmp.le.s32.totalorder 1, %s9
    %p126 = scmp.lt.s32.totalorder %s9, 3
    %p127 = pnand %p125, %p126
    %p128 = pneg %p127
    // Predicated region
    $region9: #{basic_conv2d.1} parent=5 // pred_check
      _
    $region10: #{basic_conv2d.1} parent=5 // pred_check_branch
      %130 = sbr.rel (%p127) target = $region12
    $region11: #{basic_conv2d.1} parent=5 // pred_region
      %s131 = ssub.s32 %s9, 1
      // Predicated region
      $region13: #{basic_conv2d.1} parent=11 // pred_check
        %p132 = pneg %p68
      $region14: #{basic_conv2d.1} parent=11 // pred_check_branch
        %134 = sbr.rel (%p132) target = $region16
      $region15: #{basic_conv2d.1} parent=11 // pred_region
        _
      $region16: #{basic_conv2d.1} parent=11 // pred_fallthru
        _
      // Predicated region
      $region17: #{basic_conv2d.1} parent=11 // pred_check
        %p135 = pneg %p89
      $region18: #{basic_conv2d.1} parent=11 // pred_check_branch
        %137 = sbr.rel (%p135) target = $region20
      $region19: #{basic_conv2d.1} parent=11 // pred_region
        _
      $region20: #{basic_conv2d.1} parent=11 // pred_fallthru
        _
    $region12: #{basic_conv2d.1} parent=5 // pred_fallthru
      _
    %p138 = scmp.lt.s32.totalorder %s9, 2
    // Predicated region
    $region21: #{basic_conv2d.1} parent=5 // pred_check
      %p139 = pneg %p138
    $region22: #{basic_conv2d.1} parent=5 // pred_check_branch
      %141 = sbr.rel (%p139) target = $region24
    $region23: #{basic_conv2d.1} parent=5 // pred_region
      // Predicated region
      $region25: #{basic_conv2d.1} parent=23 // pred_check
        %p142 = pneg %p41
      $region26: #{basic_conv2d.1} parent=23 // pred_check_branch
        %144 = sbr.rel (%p142) target = $region28
      $region27: #{basic_conv2d.1} parent=23 // pred_region
        %p145 = scmp.lt.s32.totalorder %s16, 1
        %s146 = scalar_select %p145, %s16, 1
        %s147 = smul.addr %s146, 12
        %s148 = smul.addr %s147, 4
        %s149 = scalar_lea.vmem %s0, %s148
      $region28: #{basic_conv2d.1} parent=23 // pred_fallthru
        _
    $region24: #{basic_conv2d.1} parent=5 // pred_fallthru
      _
    %p150 = scmp.le.s32.totalorder 1, %s9
    %p151 = scmp.lt.s32.totalorder %s9, 3
    %p152 = pnand %p150, %p151
    %p153 = pneg %p152
    // Predicated region
    $region29: #{basic_conv2d.1} parent=5 // pred_check
      _
    $region30: #{basic_conv2d.1} parent=5 // pred_check_branch
      %155 = sbr.rel (%p152) target = $region32
    $region31: #{basic_conv2d.1} parent=5 // pred_region
      %s156 = ssub.s32 %s9, 1
      %p157 = scmp.lt.s32.totalorder %s18, 1
      %s158 = scalar_select %p157, %s18, 1
      %s159 = smul.addr %s158, 12
      %s160 = smul.addr %s159, 4
      %s161 = scalar_lea.vmem %s0, %s160
      %p162 = pneg %p47
      %p163 = pneg %p44
      %p164 = pneg %p68
      %p165 = pneg %p65
      %p166 = pneg %p89
      %p167 = pneg %p86
      %p168 = pneg %p117
      %p169 = pneg %p114
      %s170 = smul.u32 2, %s19
      %p171 = scmp.lt.s32.totalorder %s18, 1
      %s172 = scalar_select %p171, %s18, 1
      %p173 = scmp.lt.s32.totalorder %s170, 1
      %s174 = scalar_select %p173, %s170, 1
      %s175 = smul.addr %s172, 2
      %s176 = sadd.s32 %s174, %s175
      %s177 = smul.addr %s176, 8
      %s178 = scalar_lea.vmem %s3, %s177
      %p179 = scmp.lt.s32.totalorder %s18, 1
      %s180 = scalar_select %p179, %s18, 1
      %s181 = smul.addr %s180, 12
      %s182 = smul.addr %s181, 4
      %s183 = scalar_lea.vmem %s0, %s182
      %s184 = smul.u32 2, %s19
      %p185 = scmp.lt.s32.totalorder %s18, 1
      %s186 = scalar_select %p185, %s18, 1
      %p187 = scmp.lt.s32.totalorder %s184, 1
      %s188 = scalar_select %p187, %s184, 1
      %s189 = smul.addr %s186, 2
      %s190 = sadd.s32 %s188, %s189
      %s191 = smul.addr %s190, 8
      %s192 = scalar_lea.vmem %s3, %s191
      %s193 = smul.u32 2, %s19
      %s195 = smul.u32 %s19, 16
      %s196 = sshra.s32 %s195, 3
      %s197 = sand.u32 %s195, 7
      %s198 = smul.addr %s196, 4
      %s199 = scalar_lea.vmem %s183, %s198
      %v200 = vld [vmem:[%s199] sm:$0xf]
      %v201 = vld [vmem:[%s199 + $0x4] sm:$0xf]
      %v202 = vld [vmem:[%s199 + $0x8] sm:$0x1]
      %v203 = vld [vmem:[%s199 + $0xc] sm:$0xf]
      %v204 = vld [vmem:[%s199 + $0x10] sm:$0xf]
      %v205 = vld [vmem:[%s199 + $0x14] sm:$0x1]
      %v206 = vld [vmem:[%s199 + $0x18] sm:$0xf]
      %v207 = vld [vmem:[%s199 + $0x1c] sm:$0xf]
      %v208 = vld [vmem:[%s199 + $0x20] sm:$0x1]
      %v209 = vld [vmem:[%s199 + $0x24] sm:$0xf]
      %v210 = vld [vmem:[%s199 + $0x28] sm:$0xf]
      %v211 = vld [vmem:[%s199 + $0x2c] sm:$0x1]
      %220 = vrot.lane.b32.xlu0 %v200, 127
      %v221 = vpop.permute.xlu0 %220
      %222 = vrot.lane.b32.xlu0 %v201, 127
      %v223 = vpop.permute.xlu0 %222
      %224 = vrot.lane.b32.xlu0 %v203, 127
      %v225 = vpop.permute.xlu0 %224
      %226 = vrot.lane.b32.xlu0 %v204, 127
      %v227 = vpop.permute.xlu0 %226
      %228 = vrot.lane.b32.xlu0 %v206, 127
      %v229 = vpop.permute.xlu0 %228
      %230 = vrot.lane.b32.xlu0 %v207, 127
      %v231 = vpop.permute.xlu0 %230
      %232 = vrot.lane.b32.xlu0 %v209, 127
      %v233 = vpop.permute.xlu0 %232
      %234 = vrot.lane.b32.xlu0 %v210, 127
      %v235 = vpop.permute.xlu0 %234
      %236 = vrot.lane.b32.xlu0 %v200, 126
      %v237 = vpop.permute.xlu0 %236
      %238 = vrot.lane.b32.xlu0 %v201, 126
      %v239 = vpop.permute.xlu0 %238
      %240 = vrot.lane.b32.xlu0 %v203, 126
      %v241 = vpop.permute.xlu0 %240
      %242 = vrot.lane.b32.xlu0 %v204, 126
      %v243 = vpop.permute.xlu0 %242
      %244 = vrot.lane.b32.xlu0 %v206, 126
      %v245 = vpop.permute.xlu0 %244
      %246 = vrot.lane.b32.xlu0 %v207, 126
      %v247 = vpop.permute.xlu0 %246
      %248 = vrot.lane.b32.xlu0 %v209, 126
      %v249 = vpop.permute.xlu0 %248
      %250 = vrot.lane.b32.xlu0 %v210, 126
      %v251 = vpop.permute.xlu0 %250
      %vm252 = vsmask.f32 3328
      %vm253 = vsmask.f32 7440
      %vm254 = vmor %vm252, %vm253
      %v256 = vshrl.u32 %v200, 16
      %v258 = vrot.slane %v256, 4
      %v259 = vshll.u32 %v200, 16
      %v261 = vrot.slane %v259, 5
      %v262 = vor.u32 %v258, %v261
      %v263 = vrot.slane %v262, 4
      %v265 = vshll.u32 %v201, 16
      %v267 = vrot.slane %v265, 5
      %v268 = vsel %vm254, %v263, %v267
      %v269 = vshrl.u32 %v201, 16
      %v271 = vrot.slane %v269, 4
      %v272 = vor.u32 %v271, %v267
      %v273 = vrot.slane %v272, 4
      %v275 = vshll.u32 %v202, 16
      %v277 = vrot.slane %v275, 5
      %v278 = vsel %vm254, %v273, %v277
      %v280 = vshrl.u32 %v203, 16
      %v282 = vrot.slane %v280, 4
      %v283 = vshll.u32 %v203, 16
      %v285 = vrot.slane %v283, 5
      %v286 = vor.u32 %v282, %v285
      %v287 = vrot.slane %v286, 4
      %v289 = vshll.u32 %v204, 16
      %v291 = vrot.slane %v289, 5
      %v292 = vsel %vm254, %v287, %v291
      %v293 = vshrl.u32 %v204, 16
      %v295 = vrot.slane %v293, 4
      %v296 = vor.u32 %v295, %v291
      %v297 = vrot.slane %v296, 4
      %v299 = vshll.u32 %v205, 16
      %v301 = vrot.slane %v299, 5
      %v302 = vsel %vm254, %v297, %v301
      %v304 = vshrl.u32 %v206, 16
      %v306 = vrot.slane %v304, 4
      %v307 = vshll.u32 %v206, 16
      %v309 = vrot.slane %v307, 5
      %v310 = vor.u32 %v306, %v309
      %v311 = vrot.slane %v310, 4
      %v313 = vshll.u32 %v207, 16
      %v315 = vrot.slane %v313, 5
      %v316 = vsel %vm254, %v311, %v315
      %v317 = vshrl.u32 %v207, 16
      %v319 = vrot.slane %v317, 4
      %v320 = vor.u32 %v319, %v315
      %v321 = vrot.slane %v320, 4
      %v323 = vshll.u32 %v208, 16
      %v325 = vrot.slane %v323, 5
      %v326 = vsel %vm254, %v321, %v325
      %v328 = vshrl.u32 %v209, 16
      %v330 = vrot.slane %v328, 4
      %v331 = vshll.u32 %v209, 16
      %v333 = vrot.slane %v331, 5
      %v334 = vor.u32 %v330, %v333
      %v335 = vrot.slane %v334, 4
      %v337 = vshll.u32 %v210, 16
      %v339 = vrot.slane %v337, 5
      %v340 = vsel %vm254, %v335, %v339
      %v341 = vshrl.u32 %v210, 16
      %v343 = vrot.slane %v341, 4
      %v344 = vor.u32 %v343, %v339
      %v345 = vrot.slane %v344, 4
      %v347 = vshll.u32 %v211, 16
      %v349 = vrot.slane %v347, 5
      %v350 = vsel %vm254, %v345, %v349
      %351 = vrot.lane.b32.xlu0 %v268, 127
      %v352 = vpop.permute.xlu0 %351
      %353 = vrot.lane.b32.xlu0 %v278, 127
      %v354 = vpop.permute.xlu0 %353
      %355 = vrot.lane.b32.xlu0 %v292, 127
      %v356 = vpop.permute.xlu0 %355
      %357 = vrot.lane.b32.xlu0 %v302, 127
      %v358 = vpop.permute.xlu0 %357
      %359 = vrot.lane.b32.xlu0 %v316, 127
      %v360 = vpop.permute.xlu0 %359
      %361 = vrot.lane.b32.xlu0 %v326, 127
      %v362 = vpop.permute.xlu0 %361
      %363 = vrot.lane.b32.xlu0 %v340, 127
      %v364 = vpop.permute.xlu0 %363
      %365 = vrot.lane.b32.xlu0 %v350, 127
      %v366 = vpop.permute.xlu0 %365
      %367 = vrot.lane.b32.xlu0 %v268, 126
      %v368 = vpop.permute.xlu0 %367
      %369 = vrot.lane.b32.xlu0 %v278, 126
      %v370 = vpop.permute.xlu0 %369
      %371 = vrot.lane.b32.xlu0 %v292, 126
      %v372 = vpop.permute.xlu0 %371
      %373 = vrot.lane.b32.xlu0 %v302, 126
      %v374 = vpop.permute.xlu0 %373
      %375 = vrot.lane.b32.xlu0 %v316, 126
      %v376 = vpop.permute.xlu0 %375
      %377 = vrot.lane.b32.xlu0 %v326, 126
      %v378 = vpop.permute.xlu0 %377
      %379 = vrot.lane.b32.xlu0 %v340, 126
      %v380 = vpop.permute.xlu0 %379
      %381 = vrot.lane.b32.xlu0 %v350, 126
      %v382 = vpop.permute.xlu0 %381
      %vm387 = vcmask 1042432
      %vm388 = vcmask 1046532
      %vm389 = vmor %vm387, %vm388
      %v390 = vrot.slane %v200, 5
      %v391 = vrot.slane %v390, 4
      %v392 = vrot.slane %v201, 5
      %v393 = vsel %vm389, %v391, %v392
      %v394 = vrot.slane %v392, 4
      %v395 = vrot.slane %v202, 5
      %v396 = vsel %vm389, %v394, %v395
      %v397 = vrot.slane %v203, 5
      %v398 = vrot.slane %v397, 4
      %v399 = vrot.slane %v204, 5
      %v400 = vsel %vm389, %v398, %v399
      %v401 = vrot.slane %v399, 4
      %v402 = vrot.slane %v205, 5
      %v403 = vsel %vm389, %v401, %v402
      %v404 = vrot.slane %v206, 5
      %v405 = vrot.slane %v404, 4
      %v406 = vrot.slane %v207, 5
      %v407 = vsel %vm389, %v405, %v406
      %v408 = vrot.slane %v406, 4
      %v409 = vrot.slane %v208, 5
      %v410 = vsel %vm389, %v408, %v409
      %v411 = vrot.slane %v209, 5
      %v412 = vrot.slane %v411, 4
      %v413 = vrot.slane %v210, 5
      %v414 = vsel %vm389, %v412, %v413
      %v415 = vrot.slane %v413, 4
      %v416 = vrot.slane %v211, 5
      %v417 = vsel %vm389, %v415, %v416
      %418 = vrot.lane.b32.xlu0 %v393, 127
      %v419 = vpop.permute.xlu0 %418
      %420 = vrot.lane.b32.xlu0 %v396, 127
      %v421 = vpop.permute.xlu0 %420
      %422 = vrot.lane.b32.xlu0 %v400, 127
      %v423 = vpop.permute.xlu0 %422
      %424 = vrot.lane.b32.xlu0 %v403, 127
      %v425 = vpop.permute.xlu0 %424
      %426 = vrot.lane.b32.xlu0 %v407, 127
      %v427 = vpop.permute.xlu0 %426
      %428 = vrot.lane.b32.xlu0 %v410, 127
      %v429 = vpop.permute.xlu0 %428
      %430 = vrot.lane.b32.xlu0 %v414, 127
      %v431 = vpop.permute.xlu0 %430
      %432 = vrot.lane.b32.xlu0 %v417, 127
      %v433 = vpop.permute.xlu0 %432
      %434 = vrot.lane.b32.xlu0 %v393, 126
      %v435 = vpop.permute.xlu0 %434
      %436 = vrot.lane.b32.xlu0 %v396, 126
      %v437 = vpop.permute.xlu0 %436
      %438 = vrot.lane.b32.xlu0 %v400, 126
      %v439 = vpop.permute.xlu0 %438
      %440 = vrot.lane.b32.xlu0 %v403, 126
      %v441 = vpop.permute.xlu0 %440
      %442 = vrot.lane.b32.xlu0 %v407, 126
      %v443 = vpop.permute.xlu0 %442
      %444 = vrot.lane.b32.xlu0 %v410, 126
      %v445 = vpop.permute.xlu0 %444
      %446 = vrot.lane.b32.xlu0 %v414, 126
      %v447 = vpop.permute.xlu0 %446
      %448 = vrot.lane.b32.xlu0 %v417, 126
      %v449 = vpop.permute.xlu0 %448
      %v450 = vpack.i.b16 %v203, %v200
      %v452 = vpack.i.b16 %v280, %v256
      %v454 = vpack.i.b16 %v209, %v206
      %v456 = vpack.i.b16 %v328, %v304
      %v460 = vpack.i.b16 %v225, %v221
      %v462 = vshrl.u32 %v221, 16
      %v463 = vshrl.u32 %v225, 16
      %v464 = vpack.i.b16 %v463, %v462
      %v468 = vpack.i.b16 %v233, %v229
      %v470 = vshrl.u32 %v229, 16
      %v471 = vshrl.u32 %v233, 16
      %v472 = vpack.i.b16 %v471, %v470
      %v476 = vpack.i.b16 %v241, %v237
      %v478 = vshrl.u32 %v237, 16
      %v479 = vshrl.u32 %v241, 16
      %v480 = vpack.i.b16 %v479, %v478
      %v484 = vpack.i.b16 %v249, %v245
      %v486 = vshrl.u32 %v245, 16
      %v487 = vshrl.u32 %v249, 16
      %v488 = vpack.i.b16 %v487, %v486
      %v492 = vpack.i.b16 %v292, %v268
      %v494 = vshrl.u32 %v268, 16
      %v495 = vshrl.u32 %v292, 16
      %v496 = vpack.i.b16 %v495, %v494
      %v500 = vpack.i.b16 %v340, %v316
      %v502 = vshrl.u32 %v316, 16
      %v503 = vshrl.u32 %v340, 16
      %v504 = vpack.i.b16 %v503, %v502
      %v508 = vpack.i.b16 %v356, %v352
      %v510 = vshrl.u32 %v352, 16
      %v511 = vshrl.u32 %v356, 16
      %v512 = vpack.i.b16 %v511, %v510
      %v516 = vpack.i.b16 %v364, %v360
      %v518 = vshrl.u32 %v360, 16
      %v519 = vshrl.u32 %v364, 16
      %v520 = vpack.i.b16 %v519, %v518
      %v524 = vpack.i.b16 %v372, %v368
      %v526 = vshrl.u32 %v368, 16
      %v527 = vshrl.u32 %v372, 16
      %v528 = vpack.i.b16 %v527, %v526
      %v532 = vpack.i.b16 %v380, %v376
      %v534 = vshrl.u32 %v376, 16
      %v535 = vshrl.u32 %v380, 16
      %v536 = vpack.i.b16 %v535, %v534
      %v540 = vpack.i.b16 %v400, %v393
      %v542 = vshrl.u32 %v393, 16
      %v543 = vshrl.u32 %v400, 16
      %v544 = vpack.i.b16 %v543, %v542
      %v548 = vpack.i.b16 %v414, %v407
      %v550 = vshrl.u32 %v407, 16
      %v551 = vshrl.u32 %v414, 16
      %v552 = vpack.i.b16 %v551, %v550
      %v556 = vpack.i.b16 %v423, %v419
      %v558 = vshrl.u32 %v419, 16
      %v559 = vshrl.u32 %v423, 16
      %v560 = vpack.i.b16 %v559, %v558
      %v564 = vpack.i.b16 %v431, %v427
      %v566 = vshrl.u32 %v427, 16
      %v567 = vshrl.u32 %v431, 16
      %v568 = vpack.i.b16 %v567, %v566
      %v572 = vpack.i.b16 %v439, %v435
      %v573 = vshrl.u32 %v435, 16
      %v574 = vshrl.u32 %v439, 16
      %v575 = vpack.i.b16 %v574, %v573
      %v578 = vpack.i.b16 %v447, %v443
      %v579 = vshrl.u32 %v443, 16
      %v580 = vshrl.u32 %v447, 16
      %v581 = vpack.i.b16 %v580, %v579
      %v582 = vpack.i.b16 %v204, %v201
      %v584 = vpack.i.b16 %v293, %v269
      %v586 = vpack.i.b16 %v210, %v207
      %v588 = vpack.i.b16 %v341, %v317
      %v592 = vpack.i.b16 %v227, %v223
      %v594 = vshrl.u32 %v223, 16
      %v595 = vshrl.u32 %v227, 16
      %v596 = vpack.i.b16 %v595, %v594
      %v600 = vpack.i.b16 %v235, %v231
      %v602 = vshrl.u32 %v231, 16
      %v603 = vshrl.u32 %v235, 16
      %v604 = vpack.i.b16 %v603, %v602
      %v608 = vpack.i.b16 %v243, %v239
      %v610 = vshrl.u32 %v239, 16
      %v611 = vshrl.u32 %v243, 16
      %v612 = vpack.i.b16 %v611, %v610
      %v616 = vpack.i.b16 %v251, %v247
      %v618 = vshrl.u32 %v247, 16
      %v619 = vshrl.u32 %v251, 16
      %v620 = vpack.i.b16 %v619, %v618
      %v624 = vpack.i.b16 %v302, %v278
      %v626 = vshrl.u32 %v278, 16
      %v627 = vshrl.u32 %v302, 16
      %v628 = vpack.i.b16 %v627, %v626
      %v632 = vpack.i.b16 %v350, %v326
      %v634 = vshrl.u32 %v326, 16
      %v635 = vshrl.u32 %v350, 16
      %v636 = vpack.i.b16 %v635, %v634
      %v640 = vpack.i.b16 %v358, %v354
      %v642 = vshrl.u32 %v354, 16
      %v643 = vshrl.u32 %v358, 16
      %v644 = vpack.i.b16 %v643, %v642
      %v648 = vpack.i.b16 %v366, %v362
      %v650 = vshrl.u32 %v362, 16
      %v651 = vshrl.u32 %v366, 16
      %v652 = vpack.i.b16 %v651, %v650
      %v656 = vpack.i.b16 %v374, %v370
      %v658 = vshrl.u32 %v370, 16
      %v659 = vshrl.u32 %v374, 16
      %v660 = vpack.i.b16 %v659, %v658
      %v664 = vpack.i.b16 %v382, %v378
      %v666 = vshrl.u32 %v378, 16
      %v667 = vshrl.u32 %v382, 16
      %v668 = vpack.i.b16 %v667, %v666
      %v672 = vpack.i.b16 %v403, %v396
      %v674 = vshrl.u32 %v396, 16
      %v675 = vshrl.u32 %v403, 16
      %v676 = vpack.i.b16 %v675, %v674
      %v680 = vpack.i.b16 %v417, %v410
      %v682 = vshrl.u32 %v410, 16
      %v683 = vshrl.u32 %v417, 16
      %v684 = vpack.i.b16 %v683, %v682
      %v688 = vpack.i.b16 %v425, %v421
      %v690 = vshrl.u32 %v421, 16
      %v691 = vshrl.u32 %v425, 16
      %v692 = vpack.i.b16 %v691, %v690
      %v696 = vpack.i.b16 %v433, %v429
      %v698 = vshrl.u32 %v429, 16
      %v699 = vshrl.u32 %v433, 16
      %v700 = vpack.i.b16 %v699, %v698
      %v704 = vpack.i.b16 %v441, %v437
      %v705 = vshrl.u32 %v437, 16
      %v706 = vshrl.u32 %v441, 16
      %v707 = vpack.i.b16 %v706, %v705
      %v710 = vpack.i.b16 %v449, %v445
      %v711 = vshrl.u32 %v445, 16
      %v712 = vshrl.u32 %v449, 16
      %v713 = vpack.i.b16 %v712, %v711
      %v714 = vcombine.low %v450, %v460
      %v716 = vunpack.c.l.s4 1983009808
      %v717 = vunpack.c.0.s8 %v716
      %v718 = vlaneseq
      %v719 = vshrl.u32 %v718, 7
      %v720 = vsub.s32 %v717, %v719
      %v721 = vrot.slane %v714, %v720
      %v722 = vcombine.low %v454, %v468
      %v724 = vunpack.c.l.s4 1983009808
      %v725 = vunpack.c.0.s8 %v724
      %v726 = vlaneseq
      %v727 = vshrl.u32 %v726, 7
      %v728 = vsub.s32 %v725, %v727
      %v729 = vrot.slane %v722, %v728
      %v730 = vcombine.low %v721, %v729
      %v731 = vcombine.high %v721, %v729
      %v733 = vunpack.c.l.s4 1934713408
      %v734 = vunpack.c.0.s8 %v733
      %v735 = vlaneseq
      %v736 = vshrl.u32 %v735, 7
      %v737 = vsub.s32 %v734, %v736
      %v738 = vrot.slane %v730, %v737
      %v740 = vunpack.c.l.s4 1934713408
      %v741 = vunpack.c.0.s8 %v740
      %v742 = vlaneseq
      %v743 = vshrl.u32 %v742, 7
      %v744 = vsub.s32 %v741, %v743
      %v745 = vrot.slane %v731, %v744
      %v746 = vcombine.high %v738, 0
      %v747 = vcombine.high %v745, 0
      %v748 = vcombine.low %v452, %v464
      %v750 = vunpack.c.l.s4 1983009808
      %v751 = vunpack.c.0.s8 %v750
      %v752 = vlaneseq
      %v753 = vshrl.u32 %v752, 7
      %v754 = vsub.s32 %v751, %v753
      %v755 = vrot.slane %v748, %v754
      %v756 = vcombine.low %v456, %v472
      %v758 = vunpack.c.l.s4 1983009808
      %v759 = vunpack.c.0.s8 %v758
      %v760 = vlaneseq
      %v761 = vshrl.u32 %v760, 7
      %v762 = vsub.s32 %v759, %v761
      %v763 = vrot.slane %v756, %v762
      %v764 = vcombine.low %v755, %v763
      %v765 = vcombine.high %v755, %v763
      %v767 = vunpack.c.l.s4 1934713408
      %v768 = vunpack.c.0.s8 %v767
      %v769 = vlaneseq
      %v770 = vshrl.u32 %v769, 7
      %v771 = vsub.s32 %v768, %v770
      %v772 = vrot.slane %v764, %v771
      %v774 = vunpack.c.l.s4 1934713408
      %v775 = vunpack.c.0.s8 %v774
      %v776 = vlaneseq
      %v777 = vshrl.u32 %v776, 7
      %v778 = vsub.s32 %v775, %v777
      %v779 = vrot.slane %v765, %v778
      %v780 = vcombine.high %v772, 0
      %v781 = vcombine.high %v779, 0
      %v782 = vcombine.low %v476, %v492
      %v784 = vunpack.c.l.s4 1983009808
      %v785 = vunpack.c.0.s8 %v784
      %v786 = vlaneseq
      %v787 = vshrl.u32 %v786, 7
      %v788 = vsub.s32 %v785, %v787
      %v789 = vrot.slane %v782, %v788
      %v790 = vcombine.low %v484, %v500
      %v792 = vunpack.c.l.s4 1983009808
      %v793 = vunpack.c.0.s8 %v792
      %v794 = vlaneseq
      %v795 = vshrl.u32 %v794, 7
      %v796 = vsub.s32 %v793, %v795
      %v797 = vrot.slane %v790, %v796
      %v798 = vcombine.low %v789, %v797
      %v799 = vcombine.high %v789, %v797
      %v801 = vunpack.c.l.s4 1934713408
      %v802 = vunpack.c.0.s8 %v801
      %v803 = vlaneseq
      %v804 = vshrl.u32 %v803, 7
      %v805 = vsub.s32 %v802, %v804
      %v806 = vrot.slane %v798, %v805
      %v808 = vunpack.c.l.s4 1934713408
      %v809 = vunpack.c.0.s8 %v808
      %v810 = vlaneseq
      %v811 = vshrl.u32 %v810, 7
      %v812 = vsub.s32 %v809, %v811
      %v813 = vrot.slane %v799, %v812
      %v814 = vcombine.high %v806, 0
      %v815 = vcombine.high %v813, 0
      %v816 = vcombine.low %v480, %v496
      %v818 = vunpack.c.l.s4 1983009808
      %v819 = vunpack.c.0.s8 %v818
      %v820 = vlaneseq
      %v821 = vshrl.u32 %v820, 7
      %v822 = vsub.s32 %v819, %v821
      %v823 = vrot.slane %v816, %v822
      %v824 = vcombine.low %v488, %v504
      %v826 = vunpack.c.l.s4 1983009808
      %v827 = vunpack.c.0.s8 %v826
      %v828 = vlaneseq
      %v829 = vshrl.u32 %v828, 7
      %v830 = vsub.s32 %v827, %v829
      %v831 = vrot.slane %v824, %v830
      %v832 = vcombine.low %v823, %v831
      %v833 = vcombine.high %v823, %v831
      %v835 = vunpack.c.l.s4 1934713408
      %v836 = vunpack.c.0.s8 %v835
      %v837 = vlaneseq
      %v838 = vshrl.u32 %v837, 7
      %v839 = vsub.s32 %v836, %v838
      %v840 = vrot.slane %v832, %v839
      %v842 = vunpack.c.l.s4 1934713408
      %v843 = vunpack.c.0.s8 %v842
      %v844 = vlaneseq
      %v845 = vshrl.u32 %v844, 7
      %v846 = vsub.s32 %v843, %v845
      %v847 = vrot.slane %v833, %v846
      %v848 = vcombine.high %v840, 0
      %v849 = vcombine.high %v847, 0
      %v850 = vcombine.low %v508, %v524
      %v852 = vunpack.c.l.s4 1983009808
      %v853 = vunpack.c.0.s8 %v852
      %v854 = vlaneseq
      %v855 = vshrl.u32 %v854, 7
      %v856 = vsub.s32 %v853, %v855
      %v857 = vrot.slane %v850, %v856
      %v858 = vcombine.low %v516, %v532
      %v860 = vunpack.c.l.s4 1983009808
      %v861 = vunpack.c.0.s8 %v860
      %v862 = vlaneseq
      %v863 = vshrl.u32 %v862, 7
      %v864 = vsub.s32 %v861, %v863
      %v865 = vrot.slane %v858, %v864
      %v866 = vcombine.low %v857, %v865
      %v867 = vcombine.high %v857, %v865
      %v869 = vunpack.c.l.s4 1934713408
      %v870 = vunpack.c.0.s8 %v869
      %v871 = vlaneseq
      %v872 = vshrl.u32 %v871, 7
      %v873 = vsub.s32 %v870, %v872
      %v874 = vrot.slane %v866, %v873
      %v876 = vunpack.c.l.s4 1934713408
      %v877 = vunpack.c.0.s8 %v876
      %v878 = vlaneseq
      %v879 = vshrl.u32 %v878, 7
      %v880 = vsub.s32 %v877, %v879
      %v881 = vrot.slane %v867, %v880
      %v882 = vcombine.high %v874, 0
      %v883 = vcombine.high %v881, 0
      %v884 = vcombine.low %v512, %v528
      %v886 = vunpack.c.l.s4 1983009808
      %v887 = vunpack.c.0.s8 %v886
      %v888 = vlaneseq
      %v889 = vshrl.u32 %v888, 7
      %v890 = vsub.s32 %v887, %v889
      %v891 = vrot.slane %v884, %v890
      %v892 = vcombine.low %v520, %v536
      %v894 = vunpack.c.l.s4 1983009808
      %v895 = vunpack.c.0.s8 %v894
      %v896 = vlaneseq
      %v897 = vshrl.u32 %v896, 7
      %v898 = vsub.s32 %v895, %v897
      %v899 = vrot.slane %v892, %v898
      %v900 = vcombine.low %v891, %v899
      %v901 = vcombine.high %v891, %v899
      %v903 = vunpack.c.l.s4 1934713408
      %v904 = vunpack.c.0.s8 %v903
      %v905 = vlaneseq
      %v906 = vshrl.u32 %v905, 7
      %v907 = vsub.s32 %v904, %v906
      %v908 = vrot.slane %v900, %v907
      %v910 = vunpack.c.l.s4 1934713408
      %v911 = vunpack.c.0.s8 %v910
      %v912 = vlaneseq
      %v913 = vshrl.u32 %v912, 7
      %v914 = vsub.s32 %v911, %v913
      %v915 = vrot.slane %v901, %v914
      %v916 = vcombine.high %v908, 0
      %v917 = vcombine.high %v915, 0
      %v918 = vcombine.low %v540, %v556
      %v920 = vunpack.c.l.s4 1983009808
      %v921 = vunpack.c.0.s8 %v920
      %v922 = vlaneseq
      %v923 = vshrl.u32 %v922, 7
      %v924 = vsub.s32 %v921, %v923
      %v925 = vrot.slane %v918, %v924
      %v926 = vcombine.low %v548, %v564
      %v928 = vunpack.c.l.s4 1983009808
      %v929 = vunpack.c.0.s8 %v928
      %v930 = vlaneseq
      %v931 = vshrl.u32 %v930, 7
      %v932 = vsub.s32 %v929, %v931
      %v933 = vrot.slane %v926, %v932
      %v934 = vcombine.low %v925, %v933
      %v935 = vcombine.high %v925, %v933
      %v937 = vunpack.c.l.s4 1934713408
      %v938 = vunpack.c.0.s8 %v937
      %v939 = vlaneseq
      %v940 = vshrl.u32 %v939, 7
      %v941 = vsub.s32 %v938, %v940
      %v942 = vrot.slane %v934, %v941
      %v944 = vunpack.c.l.s4 1934713408
      %v945 = vunpack.c.0.s8 %v944
      %v946 = vlaneseq
      %v947 = vshrl.u32 %v946, 7
      %v948 = vsub.s32 %v945, %v947
      %v949 = vrot.slane %v935, %v948
      %v950 = vcombine.high %v942, 0
      %v951 = vcombine.high %v949, 0
      %v952 = vcombine.low %v544, %v560
      %v954 = vunpack.c.l.s4 1983009808
      %v955 = vunpack.c.0.s8 %v954
      %v956 = vlaneseq
      %v957 = vshrl.u32 %v956, 7
      %v958 = vsub.s32 %v955, %v957
      %v959 = vrot.slane %v952, %v958
      %v960 = vcombine.low %v552, %v568
      %v962 = vunpack.c.l.s4 1983009808
      %v963 = vunpack.c.0.s8 %v962
      %v964 = vlaneseq
      %v965 = vshrl.u32 %v964, 7
      %v966 = vsub.s32 %v963, %v965
      %v967 = vrot.slane %v960, %v966
      %v968 = vcombine.low %v959, %v967
      %v969 = vcombine.high %v959, %v967
      %v971 = vunpack.c.l.s4 1934713408
      %v972 = vunpack.c.0.s8 %v971
      %v973 = vlaneseq
      %v974 = vshrl.u32 %v973, 7
      %v975 = vsub.s32 %v972, %v974
      %v976 = vrot.slane %v968, %v975
      %v978 = vunpack.c.l.s4 1934713408
      %v979 = vunpack.c.0.s8 %v978
      %v980 = vlaneseq
      %v981 = vshrl.u32 %v980, 7
      %v982 = vsub.s32 %v979, %v981
      %v983 = vrot.slane %v969, %v982
      %v984 = vcombine.high %v976, 0
      %v985 = vcombine.high %v983, 0
      %v988 = vunpack.c.l.s4 1983009808
      %v989 = vunpack.c.0.s8 %v988
      %v990 = vlaneseq
      %v991 = vshrl.u32 %v990, 7
      %v992 = vsub.s32 %v989, %v991
      %v993 = vrot.slane %v572, %v992
      %v996 = vunpack.c.l.s4 1983009808
      %v997 = vunpack.c.0.s8 %v996
      %v998 = vlaneseq
      %v999 = vshrl.u32 %v998, 7
      %v1000 = vsub.s32 %v997, %v999
      %v1001 = vrot.slane %v578, %v1000
      %v1002 = vcombine.low %v993, %v1001
      %v1003 = vcombine.high %v993, %v1001
      %v1005 = vunpack.c.l.s4 1934713408
      %v1006 = vunpack.c.0.s8 %v1005
      %v1007 = vlaneseq
      %v1008 = vshrl.u32 %v1007, 7
      %v1009 = vsub.s32 %v1006, %v1008
      %v1010 = vrot.slane %v1002, %v1009
      %v1012 = vunpack.c.l.s4 1934713408
      %v1013 = vunpack.c.0.s8 %v1012
      %v1014 = vlaneseq
      %v1015 = vshrl.u32 %v1014, 7
      %v1016 = vsub.s32 %v1013, %v1015
      %v1017 = vrot.slane %v1003, %v1016
      %v1018 = vcombine.high %v1010, 0
      %v1019 = vcombine.high %v1017, 0
      %v1022 = vunpack.c.l.s4 1983009808
      %v1023 = vunpack.c.0.s8 %v1022
      %v1024 = vlaneseq
      %v1025 = vshrl.u32 %v1024, 7
      %v1026 = vsub.s32 %v1023, %v1025
      %v1027 = vrot.slane %v575, %v1026
      %v1030 = vunpack.c.l.s4 1983009808
      %v1031 = vunpack.c.0.s8 %v1030
      %v1032 = vlaneseq
      %v1033 = vshrl.u32 %v1032, 7
      %v1034 = vsub.s32 %v1031, %v1033
      %v1035 = vrot.slane %v581, %v1034
      %v1036 = vcombine.low %v1027, %v1035
      %v1037 = vcombine.high %v1027, %v1035
      %v1039 = vunpack.c.l.s4 1934713408
      %v1040 = vunpack.c.0.s8 %v1039
      %v1041 = vlaneseq
      %v1042 = vshrl.u32 %v1041, 7
      %v1043 = vsub.s32 %v1040, %v1042
      %v1044 = vrot.slane %v1036, %v1043
      %v1046 = vunpack.c.l.s4 1934713408
      %v1047 = vunpack.c.0.s8 %v1046
      %v1048 = vlaneseq
      %v1049 = vshrl.u32 %v1048, 7
      %v1050 = vsub.s32 %v1047, %v1049
      %v1051 = vrot.slane %v1037, %v1050
      %v1052 = vcombine.high %v1044, 0
      %v1053 = vcombine.high %v1051, 0
      %v1054 = vcombine.low %v582, %v592
      %v1056 = vunpack.c.l.s4 1983009808
      %v1057 = vunpack.c.0.s8 %v1056
      %v1058 = vlaneseq
      %v1059 = vshrl.u32 %v1058, 7
      %v1060 = vsub.s32 %v1057, %v1059
      %v1061 = vrot.slane %v1054, %v1060
      %v1062 = vcombine.low %v586, %v600
      %v1064 = vunpack.c.l.s4 1983009808
      %v1065 = vunpack.c.0.s8 %v1064
      %v1066 = vlaneseq
      %v1067 = vshrl.u32 %v1066, 7
      %v1068 = vsub.s32 %v1065, %v1067
      %v1069 = vrot.slane %v1062, %v1068
      %v1070 = vcombine.low %v1061, %v1069
      %v1071 = vcombine.high %v1061, %v1069
      %v1073 = vunpack.c.l.s4 1934713408
      %v1074 = vunpack.c.0.s8 %v1073
      %v1075 = vlaneseq
      %v1076 = vshrl.u32 %v1075, 7
      %v1077 = vsub.s32 %v1074, %v1076
      %v1078 = vrot.slane %v1070, %v1077
      %v1080 = vunpack.c.l.s4 1934713408
      %v1081 = vunpack.c.0.s8 %v1080
      %v1082 = vlaneseq
      %v1083 = vshrl.u32 %v1082, 7
      %v1084 = vsub.s32 %v1081, %v1083
      %v1085 = vrot.slane %v1071, %v1084
      %v1086 = vcombine.high %v1078, 0
      %v1087 = vcombine.high %v1085, 0
      %v1088 = vcombine.low %v584, %v596
      %v1090 = vunpack.c.l.s4 1983009808
      %v1091 = vunpack.c.0.s8 %v1090
      %v1092 = vlaneseq
      %v1093 = vshrl.u32 %v1092, 7
      %v1094 = vsub.s32 %v1091, %v1093
      %v1095 = vrot.slane %v1088, %v1094
      %v1096 = vcombine.low %v588, %v604
      %v1098 = vunpack.c.l.s4 1983009808
      %v1099 = vunpack.c.0.s8 %v1098
      %v1100 = vlaneseq
      %v1101 = vshrl.u32 %v1100, 7
      %v1102 = vsub.s32 %v1099, %v1101
      %v1103 = vrot.slane %v1096, %v1102
      %v1104 = vcombine.low %v1095, %v1103
      %v1105 = vcombine.high %v1095, %v1103
      %v1107 = vunpack.c.l.s4 1934713408
      %v1108 = vunpack.c.0.s8 %v1107
      %v1109 = vlaneseq
      %v1110 = vshrl.u32 %v1109, 7
      %v1111 = vsub.s32 %v1108, %v1110
      %v1112 = vrot.slane %v1104, %v1111
      %v1114 = vunpack.c.l.s4 1934713408
      %v1115 = vunpack.c.0.s8 %v1114
      %v1116 = vlaneseq
      %v1117 = vshrl.u32 %v1116, 7
      %v1118 = vsub.s32 %v1115, %v1117
      %v1119 = vrot.slane %v1105, %v1118
      %v1120 = vcombine.high %v1112, 0
      %v1121 = vcombine.high %v1119, 0
      %v1122 = vcombine.low %v608, %v624
      %v1124 = vunpack.c.l.s4 1983009808
      %v1125 = vunpack.c.0.s8 %v1124
      %v1126 = vlaneseq
      %v1127 = vshrl.u32 %v1126, 7
      %v1128 = vsub.s32 %v1125, %v1127
      %v1129 = vrot.slane %v1122, %v1128
      %v1130 = vcombine.low %v616, %v632
      %v1132 = vunpack.c.l.s4 1983009808
      %v1133 = vunpack.c.0.s8 %v1132
      %v1134 = vlaneseq
      %v1135 = vshrl.u32 %v1134, 7
      %v1136 = vsub.s32 %v1133, %v1135
      %v1137 = vrot.slane %v1130, %v1136
      %v1138 = vcombine.low %v1129, %v1137
      %v1139 = vcombine.high %v1129, %v1137
      %v1141 = vunpack.c.l.s4 1934713408
      %v1142 = vunpack.c.0.s8 %v1141
      %v1143 = vlaneseq
      %v1144 = vshrl.u32 %v1143, 7
      %v1145 = vsub.s32 %v1142, %v1144
      %v1146 = vrot.slane %v1138, %v1145
      %v1148 = vunpack.c.l.s4 1934713408
      %v1149 = vunpack.c.0.s8 %v1148
      %v1150 = vlaneseq
      %v1151 = vshrl.u32 %v1150, 7
      %v1152 = vsub.s32 %v1149, %v1151
      %v1153 = vrot.slane %v1139, %v1152
      %v1154 = vcombine.high %v1146, 0
      %v1155 = vcombine.high %v1153, 0
      %v1156 = vcombine.low %v612, %v628
      %v1158 = vunpack.c.l.s4 1983009808
      %v1159 = vunpack.c.0.s8 %v1158
      %v1160 = vlaneseq
      %v1161 = vshrl.u32 %v1160, 7
      %v1162 = vsub.s32 %v1159, %v1161
      %v1163 = vrot.slane %v1156, %v1162
      %v1164 = vcombine.low %v620, %v636
      %v1166 = vunpack.c.l.s4 1983009808
      %v1167 = vunpack.c.0.s8 %v1166
      %v1168 = vlaneseq
      %v1169 = vshrl.u32 %v1168, 7
      %v1170 = vsub.s32 %v1167, %v1169
      %v1171 = vrot.slane %v1164, %v1170
      %v1172 = vcombine.low %v1163, %v1171
      %v1173 = vcombine.high %v1163, %v1171
      %v1175 = vunpack.c.l.s4 1934713408
      %v1176 = vunpack.c.0.s8 %v1175
      %v1177 = vlaneseq
      %v1178 = vshrl.u32 %v1177, 7
      %v1179 = vsub.s32 %v1176, %v1178
      %v1180 = vrot.slane %v1172, %v1179
      %v1182 = vunpack.c.l.s4 1934713408
      %v1183 = vunpack.c.0.s8 %v1182
      %v1184 = vlaneseq
      %v1185 = vshrl.u32 %v1184, 7
      %v1186 = vsub.s32 %v1183, %v1185
      %v1187 = vrot.slane %v1173, %v1186
      %v1188 = vcombine.high %v1180, 0
      %v1189 = vcombine.high %v1187, 0
      %v1190 = vcombine.low %v640, %v656
      %v1192 = vunpack.c.l.s4 1983009808
      %v1193 = vunpack.c.0.s8 %v1192
      %v1194 = vlaneseq
      %v1195 = vshrl.u32 %v1194, 7
      %v1196 = vsub.s32 %v1193, %v1195
      %v1197 = vrot.slane %v1190, %v1196
      %v1198 = vcombine.low %v648, %v664
      %v1200 = vunpack.c.l.s4 1983009808
      %v1201 = vunpack.c.0.s8 %v1200
      %v1202 = vlaneseq
      %v1203 = vshrl.u32 %v1202, 7
      %v1204 = vsub.s32 %v1201, %v1203
      %v1205 = vrot.slane %v1198, %v1204
      %v1206 = vcombine.low %v1197, %v1205
      %v1207 = vcombine.high %v1197, %v1205
      %v1209 = vunpack.c.l.s4 1934713408
      %v1210 = vunpack.c.0.s8 %v1209
      %v1211 = vlaneseq
      %v1212 = vshrl.u32 %v1211, 7
      %v1213 = vsub.s32 %v1210, %v1212
      %v1214 = vrot.slane %v1206, %v1213
      %v1216 = vunpack.c.l.s4 1934713408
      %v1217 = vunpack.c.0.s8 %v1216
      %v1218 = vlaneseq
      %v1219 = vshrl.u32 %v1218, 7
      %v1220 = vsub.s32 %v1217, %v1219
      %v1221 = vrot.slane %v1207, %v1220
      %v1222 = vcombine.high %v1214, 0
      %v1223 = vcombine.high %v1221, 0
      %v1224 = vcombine.low %v644, %v660
      %v1226 = vunpack.c.l.s4 1983009808
      %v1227 = vunpack.c.0.s8 %v1226
      %v1228 = vlaneseq
      %v1229 = vshrl.u32 %v1228, 7
      %v1230 = vsub.s32 %v1227, %v1229
      %v1231 = vrot.slane %v1224, %v1230
      %v1232 = vcombine.low %v652, %v668
      %v1234 = vunpack.c.l.s4 1983009808
      %v1235 = vunpack.c.0.s8 %v1234
      %v1236 = vlaneseq
      %v1237 = vshrl.u32 %v1236, 7
      %v1238 = vsub.s32 %v1235, %v1237
      %v1239 = vrot.slane %v1232, %v1238
      %v1240 = vcombine.low %v1231, %v1239
      %v1241 = vcombine.high %v1231, %v1239
      %v1243 = vunpack.c.l.s4 1934713408
      %v1244 = vunpack.c.0.s8 %v1243
      %v1245 = vlaneseq
      %v1246 = vshrl.u32 %v1245, 7
      %v1247 = vsub.s32 %v1244, %v1246
      %v1248 = vrot.slane %v1240, %v1247
      %v1250 = vunpack.c.l.s4 1934713408
      %v1251 = vunpack.c.0.s8 %v1250
      %v1252 = vlaneseq
      %v1253 = vshrl.u32 %v1252, 7
      %v1254 = vsub.s32 %v1251, %v1253
      %v1255 = vrot.slane %v1241, %v1254
      %v1256 = vcombine.high %v1248, 0
      %v1257 = vcombine.high %v1255, 0
      %v1258 = vcombine.low %v672, %v688
      %v1260 = vunpack.c.l.s4 1983009808
      %v1261 = vunpack.c.0.s8 %v1260
      %v1262 = vlaneseq
      %v1263 = vshrl.u32 %v1262, 7
      %v1264 = vsub.s32 %v1261, %v1263
      %v1265 = vrot.slane %v1258, %v1264
      %v1266 = vcombine.low %v680, %v696
      %v1268 = vunpack.c.l.s4 1983009808
      %v1269 = vunpack.c.0.s8 %v1268
      %v1270 = vlaneseq
      %v1271 = vshrl.u32 %v1270, 7
      %v1272 = vsub.s32 %v1269, %v1271
      %v1273 = vrot.slane %v1266, %v1272
      %v1274 = vcombine.low %v1265, %v1273
      %v1275 = vcombine.high %v1265, %v1273
      %v1277 = vunpack.c.l.s4 1934713408
      %v1278 = vunpack.c.0.s8 %v1277
      %v1279 = vlaneseq
      %v1280 = vshrl.u32 %v1279, 7
      %v1281 = vsub.s32 %v1278, %v1280
      %v1282 = vrot.slane %v1274, %v1281
      %v1284 = vunpack.c.l.s4 1934713408
      %v1285 = vunpack.c.0.s8 %v1284
      %v1286 = vlaneseq
      %v1287 = vshrl.u32 %v1286, 7
      %v1288 = vsub.s32 %v1285, %v1287
      %v1289 = vrot.slane %v1275, %v1288
      %v1290 = vcombine.high %v1282, 0
      %v1291 = vcombine.high %v1289, 0
      %v1292 = vcombine.low %v676, %v692
      %v1294 = vunpack.c.l.s4 1983009808
      %v1295 = vunpack.c.0.s8 %v1294
      %v1296 = vlaneseq
      %v1297 = vshrl.u32 %v1296, 7
      %v1298 = vsub.s32 %v1295, %v1297
      %v1299 = vrot.slane %v1292, %v1298
      %v1300 = vcombine.low %v684, %v700
      %v1302 = vunpack.c.l.s4 1983009808
      %v1303 = vunpack.c.0.s8 %v1302
      %v1304 = vlaneseq
      %v1305 = vshrl.u32 %v1304, 7
      %v1306 = vsub.s32 %v1303, %v1305
      %v1307 = vrot.slane %v1300, %v1306
      %v1308 = vcombine.low %v1299, %v1307
      %v1309 = vcombine.high %v1299, %v1307
      %v1311 = vunpack.c.l.s4 1934713408
      %v1312 = vunpack.c.0.s8 %v1311
      %v1313 = vlaneseq
      %v1314 = vshrl.u32 %v1313, 7
      %v1315 = vsub.s32 %v1312, %v1314
      %v1316 = vrot.slane %v1308, %v1315
      %v1318 = vunpack.c.l.s4 1934713408
      %v1319 = vunpack.c.0.s8 %v1318
      %v1320 = vlaneseq
      %v1321 = vshrl.u32 %v1320, 7
      %v1322 = vsub.s32 %v1319, %v1321
      %v1323 = vrot.slane %v1309, %v1322
      %v1324 = vcombine.high %v1316, 0
      %v1325 = vcombine.high %v1323, 0
      %v1328 = vunpack.c.l.s4 1983009808
      %v1329 = vunpack.c.0.s8 %v1328
      %v1330 = vlaneseq
      %v1331 = vshrl.u32 %v1330, 7
      %v1332 = vsub.s32 %v1329, %v1331
      %v1333 = vrot.slane %v704, %v1332
      %v1336 = vunpack.c.l.s4 1983009808
      %v1337 = vunpack.c.0.s8 %v1336
      %v1338 = vlaneseq
      %v1339 = vshrl.u32 %v1338, 7
      %v1340 = vsub.s32 %v1337, %v1339
      %v1341 = vrot.slane %v710, %v1340
      %v1342 = vcombine.low %v1333, %v1341
      %v1343 = vcombine.high %v1333, %v1341
      %v1345 = vunpack.c.l.s4 1934713408
      %v1346 = vunpack.c.0.s8 %v1345
      %v1347 = vlaneseq
      %v1348 = vshrl.u32 %v1347, 7
      %v1349 = vsub.s32 %v1346, %v1348
      %v1350 = vrot.slane %v1342, %v1349
      %v1352 = vunpack.c.l.s4 1934713408
      %v1353 = vunpack.c.0.s8 %v1352
      %v1354 = vlaneseq
      %v1355 = vshrl.u32 %v1354, 7
      %v1356 = vsub.s32 %v1353, %v1355
      %v1357 = vrot.slane %v1343, %v1356
      %v1358 = vcombine.high %v1350, 0
      %v1359 = vcombine.high %v1357, 0
      %v1362 = vunpack.c.l.s4 1983009808
      %v1363 = vunpack.c.0.s8 %v1362
      %v1364 = vlaneseq
      %v1365 = vshrl.u32 %v1364, 7
      %v1366 = vsub.s32 %v1363, %v1365
      %v1367 = vrot.slane %v707, %v1366
      %v1370 = vunpack.c.l.s4 1983009808
      %v1371 = vunpack.c.0.s8 %v1370
      %v1372 = vlaneseq
      %v1373 = vshrl.u32 %v1372, 7
      %v1374 = vsub.s32 %v1371, %v1373
      %v1375 = vrot.slane %v713, %v1374
      %v1376 = vcombine.low %v1367, %v1375
      %v1377 = vcombine.high %v1367, %v1375
      %v1379 = vunpack.c.l.s4 1934713408
      %v1380 = vunpack.c.0.s8 %v1379
      %v1381 = vlaneseq
      %v1382 = vshrl.u32 %v1381, 7
      %v1383 = vsub.s32 %v1380, %v1382
      %v1384 = vrot.slane %v1376, %v1383
      %v1386 = vunpack.c.l.s4 1934713408
      %v1387 = vunpack.c.0.s8 %v1386
      %v1388 = vlaneseq
      %v1389 = vshrl.u32 %v1388, 7
      %v1390 = vsub.s32 %v1387, %v1389
      %v1391 = vrot.slane %v1377, %v1390
      %v1392 = vcombine.high %v1384, 0
      %v1393 = vcombine.high %v1391, 0
      %v1399 = vunpack.c.l.b16 %v738
      %v1400 = vunpack.c.l.b16 %v806
      %v1401 = vunpack.c.l.b16 %v874
      %v1402 = vunpack.c.l.b16 %v942
      %v1403 = vunpack.c.l.b16 %v1010
      %v1404 = vpack.c.b16 %v1400, %v1399
      %v1405 = vpack.c.b16 %v1402, %v1401
      %v1406 = vpack.c.b16 %v1403, %v1403
      %v1412 = vunpack.c.l.b16 %v772
      %v1413 = vunpack.c.l.b16 %v840
      %v1414 = vunpack.c.l.b16 %v908
      %v1415 = vunpack.c.l.b16 %v976
      %v1416 = vunpack.c.l.b16 %v1044
      %v1417 = vpack.c.b16 %v1413, %v1412
      %v1418 = vpack.c.b16 %v1415, %v1414
      %v1419 = vpack.c.b16 %v1416, %v1416
      %1420 = vrot.lane.b32.xlu0 %v1417, 16
      %v1421 = vpop.permute.xlu0 %1420
      %1422 = vrot.lane.b32.xlu0 %v1418, 16
      %v1423 = vpop.permute.xlu0 %1422
      %1424 = vrot.lane.b32.xlu0 %v1419, 16
      %v1425 = vpop.permute.xlu0 %1424
      %v1431 = vunpack.c.l.b16 %v746
      %v1432 = vunpack.c.l.b16 %v814
      %v1433 = vunpack.c.l.b16 %v882
      %v1434 = vunpack.c.l.b16 %v950
      %v1435 = vunpack.c.l.b16 %v1018
      %v1436 = vpack.c.b16 %v1432, %v1431
      %v1437 = vpack.c.b16 %v1434, %v1433
      %v1438 = vpack.c.b16 %v1435, %v1435
      %1439 = vrot.lane.b32.xlu0 %v1436, 32
      %v1440 = vpop.permute.xlu0 %1439
      %1441 = vrot.lane.b32.xlu0 %v1437, 32
      %v1442 = vpop.permute.xlu0 %1441
      %1443 = vrot.lane.b32.xlu0 %v1438, 32
      %v1444 = vpop.permute.xlu0 %1443
      %v1450 = vunpack.c.l.b16 %v780
      %v1451 = vunpack.c.l.b16 %v848
      %v1452 = vunpack.c.l.b16 %v916
      %v1453 = vunpack.c.l.b16 %v984
      %v1454 = vunpack.c.l.b16 %v1052
      %v1455 = vpack.c.b16 %v1451, %v1450
      %v1456 = vpack.c.b16 %v1453, %v1452
      %v1457 = vpack.c.b16 %v1454, %v1454
      %1458 = vrot.lane.b32.xlu0 %v1455, 48
      %v1459 = vpop.permute.xlu0 %1458
      %1460 = vrot.lane.b32.xlu0 %v1456, 48
      %v1461 = vpop.permute.xlu0 %1460
      %1462 = vrot.lane.b32.xlu0 %v1457, 48
      %v1463 = vpop.permute.xlu0 %1462
      %v1469 = vunpack.c.l.b16 %v745
      %v1470 = vunpack.c.l.b16 %v813
      %v1471 = vunpack.c.l.b16 %v881
      %v1472 = vunpack.c.l.b16 %v949
      %v1473 = vunpack.c.l.b16 %v1017
      %v1474 = vpack.c.b16 %v1470, %v1469
      %v1475 = vpack.c.b16 %v1472, %v1471
      %v1476 = vpack.c.b16 %v1473, %v1473
      %1477 = vrot.lane.b32.xlu0 %v1474, 64
      %v1478 = vpop.permute.xlu0 %1477
      %1479 = vrot.lane.b32.xlu0 %v1475, 64
      %v1480 = vpop.permute.xlu0 %1479
      %1481 = vrot.lane.b32.xlu0 %v1476, 64
      %v1482 = vpop.permute.xlu0 %1481
      %v1488 = vunpack.c.l.b16 %v779
      %v1489 = vunpack.c.l.b16 %v847
      %v1490 = vunpack.c.l.b16 %v915
      %v1491 = vunpack.c.l.b16 %v983
      %v1492 = vunpack.c.l.b16 %v1051
      %v1493 = vpack.c.b16 %v1489, %v1488
      %v1494 = vpack.c.b16 %v1491, %v1490
      %v1495 = vpack.c.b16 %v1492, %v1492
      %1496 = vrot.lane.b32.xlu0 %v1493, 80
      %v1497 = vpop.permute.xlu0 %1496
      %1498 = vrot.lane.b32.xlu0 %v1494, 80
      %v1499 = vpop.permute.xlu0 %1498
      %1500 = vrot.lane.b32.xlu0 %v1495, 80
      %v1501 = vpop.permute.xlu0 %1500
      %v1507 = vunpack.c.l.b16 %v747
      %v1508 = vunpack.c.l.b16 %v815
      %v1509 = vunpack.c.l.b16 %v883
      %v1510 = vunpack.c.l.b16 %v951
      %v1511 = vunpack.c.l.b16 %v1019
      %v1512 = vpack.c.b16 %v1508, %v1507
      %v1513 = vpack.c.b16 %v1510, %v1509
      %v1514 = vpack.c.b16 %v1511, %v1511
      %1515 = vrot.lane.b32.xlu0 %v1512, 96
      %v1516 = vpop.permute.xlu0 %1515
      %1517 = vrot.lane.b32.xlu0 %v1513, 96
      %v1518 = vpop.permute.xlu0 %1517
      %1519 = vrot.lane.b32.xlu0 %v1514, 96
      %v1520 = vpop.permute.xlu0 %1519
      %v1526 = vunpack.c.l.b16 %v781
      %v1527 = vunpack.c.l.b16 %v849
      %v1528 = vunpack.c.l.b16 %v917
      %v1529 = vunpack.c.l.b16 %v985
      %v1530 = vunpack.c.l.b16 %v1053
      %v1531 = vpack.c.b16 %v1527, %v1526
      %v1532 = vpack.c.b16 %v1529, %v1528
      %v1533 = vpack.c.b16 %v1530, %v1530
      %1534 = vrot.lane.b32.xlu0 %v1531, 112
      %v1535 = vpop.permute.xlu0 %1534
      %1536 = vrot.lane.b32.xlu0 %v1532, 112
      %v1537 = vpop.permute.xlu0 %1536
      %1538 = vrot.lane.b32.xlu0 %v1533, 112
      %v1539 = vpop.permute.xlu0 %1538
      %v1545 = vunpack.c.l.b16 %v1078
      %v1546 = vunpack.c.l.b16 %v1146
      %v1547 = vunpack.c.l.b16 %v1214
      %v1548 = vunpack.c.l.b16 %v1282
      %v1549 = vunpack.c.l.b16 %v1350
      %v1550 = vpack.c.b16 %v1546, %v1545
      %v1551 = vpack.c.b16 %v1548, %v1547
      %v1552 = vpack.c.b16 %v1549, %v1549
      %v1558 = vunpack.c.l.b16 %v1112
      %v1559 = vunpack.c.l.b16 %v1180
      %v1560 = vunpack.c.l.b16 %v1248
      %v1561 = vunpack.c.l.b16 %v1316
      %v1562 = vunpack.c.l.b16 %v1384
      %v1563 = vpack.c.b16 %v1559, %v1558
      %v1564 = vpack.c.b16 %v1561, %v1560
      %v1565 = vpack.c.b16 %v1562, %v1562
      %1566 = vrot.lane.b32.xlu0 %v1563, 16
      %v1567 = vpop.permute.xlu0 %1566
      %1568 = vrot.lane.b32.xlu0 %v1564, 16
      %v1569 = vpop.permute.xlu0 %1568
      %1570 = vrot.lane.b32.xlu0 %v1565, 16
      %v1571 = vpop.permute.xlu0 %1570
      %v1577 = vunpack.c.l.b16 %v1086
      %v1578 = vunpack.c.l.b16 %v1154
      %v1579 = vunpack.c.l.b16 %v1222
      %v1580 = vunpack.c.l.b16 %v1290
      %v1581 = vunpack.c.l.b16 %v1358
      %v1582 = vpack.c.b16 %v1578, %v1577
      %v1583 = vpack.c.b16 %v1580, %v1579
      %v1584 = vpack.c.b16 %v1581, %v1581
      %1585 = vrot.lane.b32.xlu0 %v1582, 32
      %v1586 = vpop.permute.xlu0 %1585
      %1587 = vrot.lane.b32.xlu0 %v1583, 32
      %v1588 = vpop.permute.xlu0 %1587
      %1589 = vrot.lane.b32.xlu0 %v1584, 32
      %v1590 = vpop.permute.xlu0 %1589
      %v1596 = vunpack.c.l.b16 %v1120
      %v1597 = vunpack.c.l.b16 %v1188
      %v1598 = vunpack.c.l.b16 %v1256
      %v1599 = vunpack.c.l.b16 %v1324
      %v1600 = vunpack.c.l.b16 %v1392
      %v1601 = vpack.c.b16 %v1597, %v1596
      %v1602 = vpack.c.b16 %v1599, %v1598
      %v1603 = vpack.c.b16 %v1600, %v1600
      %1604 = vrot.lane.b32.xlu0 %v1601, 48
      %v1605 = vpop.permute.xlu0 %1604
      %1606 = vrot.lane.b32.xlu0 %v1602, 48
      %v1607 = vpop.permute.xlu0 %1606
      %1608 = vrot.lane.b32.xlu0 %v1603, 48
      %v1609 = vpop.permute.xlu0 %1608
      %v1615 = vunpack.c.l.b16 %v1085
      %v1616 = vunpack.c.l.b16 %v1153
      %v1617 = vunpack.c.l.b16 %v1221
      %v1618 = vunpack.c.l.b16 %v1289
      %v1619 = vunpack.c.l.b16 %v1357
      %v1620 = vpack.c.b16 %v1616, %v1615
      %v1621 = vpack.c.b16 %v1618, %v1617
      %v1622 = vpack.c.b16 %v1619, %v1619
      %1623 = vrot.lane.b32.xlu0 %v1620, 64
      %v1624 = vpop.permute.xlu0 %1623
      %1625 = vrot.lane.b32.xlu0 %v1621, 64
      %v1626 = vpop.permute.xlu0 %1625
      %1627 = vrot.lane.b32.xlu0 %v1622, 64
      %v1628 = vpop.permute.xlu0 %1627
      %v1634 = vunpack.c.l.b16 %v1119
      %v1635 = vunpack.c.l.b16 %v1187
      %v1636 = vunpack.c.l.b16 %v1255
      %v1637 = vunpack.c.l.b16 %v1323
      %v1638 = vunpack.c.l.b16 %v1391
      %v1639 = vpack.c.b16 %v1635, %v1634
      %v1640 = vpack.c.b16 %v1637, %v1636
      %v1641 = vpack.c.b16 %v1638, %v1638
      %1642 = vrot.lane.b32.xlu0 %v1639, 80
      %v1643 = vpop.permute.xlu0 %1642
      %1644 = vrot.lane.b32.xlu0 %v1640, 80
      %v1645 = vpop.permute.xlu0 %1644
      %1646 = vrot.lane.b32.xlu0 %v1641, 80
      %v1647 = vpop.permute.xlu0 %1646
      %v1653 = vunpack.c.l.b16 %v1087
      %v1654 = vunpack.c.l.b16 %v1155
      %v1655 = vunpack.c.l.b16 %v1223
      %v1656 = vunpack.c.l.b16 %v1291
      %v1657 = vunpack.c.l.b16 %v1359
      %v1658 = vpack.c.b16 %v1654, %v1653
      %v1659 = vpack.c.b16 %v1656, %v1655
      %v1660 = vpack.c.b16 %v1657, %v1657
      %1661 = vrot.lane.b32.xlu0 %v1658, 96
      %v1662 = vpop.permute.xlu0 %1661
      %1663 = vrot.lane.b32.xlu0 %v1659, 96
      %v1664 = vpop.permute.xlu0 %1663
      %1665 = vrot.lane.b32.xlu0 %v1660, 96
      %v1666 = vpop.permute.xlu0 %1665
      %v1672 = vunpack.c.l.b16 %v1121
      %v1673 = vunpack.c.l.b16 %v1189
      %v1674 = vunpack.c.l.b16 %v1257
      %v1675 = vunpack.c.l.b16 %v1325
      %v1676 = vunpack.c.l.b16 %v1393
      %v1677 = vpack.c.b16 %v1673, %v1672
      %v1678 = vpack.c.b16 %v1675, %v1674
      %v1679 = vpack.c.b16 %v1676, %v1676
      %1680 = vrot.lane.b32.xlu0 %v1677, 112
      %v1681 = vpop.permute.xlu0 %1680
      %1682 = vrot.lane.b32.xlu0 %v1678, 112
      %v1683 = vpop.permute.xlu0 %1682
      %1684 = vrot.lane.b32.xlu0 %v1679, 112
      %v1685 = vpop.permute.xlu0 %1684
      %vm1686 = vcmask 130048
      %v1689 = vsel %vm1686, %v1404, %v1421
      %v1692 = vsel %vm1686, %v1405, %v1423
      %v1695 = vsel %vm1686, %v1406, %v1425
      %vm1696 = vcmask 261120
      %v1698 = vsel %vm1696, %v1689, %v1440
      %v1700 = vsel %vm1696, %v1692, %v1442
      %v1702 = vsel %vm1696, %v1695, %v1444
      %vm1703 = vcmask 392192
      %v1705 = vsel %vm1703, %v1698, %v1459
      %v1707 = vsel %vm1703, %v1700, %v1461
      %v1709 = vsel %vm1703, %v1702, %v1463
      %vm1710 = vcmask 523264
      %v1712 = vsel %vm1710, %v1705, %v1478
      %v1714 = vsel %vm1710, %v1707, %v1480
      %v1716 = vsel %vm1710, %v1709, %v1482
      %vm1717 = vcmask 654336
      %v1719 = vsel %vm1717, %v1712, %v1497
      %v1721 = vsel %vm1717, %v1714, %v1499
      %v1723 = vsel %vm1717, %v1716, %v1501
      %vm1724 = vcmask 785408
      %v1726 = vsel %vm1724, %v1719, %v1516
      %v1728 = vsel %vm1724, %v1721, %v1518
      %v1730 = vsel %vm1724, %v1723, %v1520
      %vm1731 = vcmask 916480
      %v1733 = vsel %vm1731, %v1726, %v1535
      %v1736 = vsel %vm1731, %v1728, %v1537
      %v1739 = vsel %vm1731, %v1730, %v1539
      %v1742 = vsel %vm1686, %v1550, %v1567
      %v1745 = vsel %vm1686, %v1551, %v1569
      %v1748 = vsel %vm1686, %v1552, %v1571
      %v1750 = vsel %vm1696, %v1742, %v1586
      %v1752 = vsel %vm1696, %v1745, %v1588
      %v1754 = vsel %vm1696, %v1748, %v1590
      %v1756 = vsel %vm1703, %v1750, %v1605
      %v1758 = vsel %vm1703, %v1752, %v1607
      %v1760 = vsel %vm1703, %v1754, %v1609
      %v1762 = vsel %vm1710, %v1756, %v1624
      %v1764 = vsel %vm1710, %v1758, %v1626
      %v1766 = vsel %vm1710, %v1760, %v1628
      %v1768 = vsel %vm1717, %v1762, %v1643
      %v1770 = vsel %vm1717, %v1764, %v1645
      %v1772 = vsel %vm1717, %v1766, %v1647
      %v1774 = vsel %vm1724, %v1768, %v1662
      %v1776 = vsel %vm1724, %v1770, %v1664
      %v1778 = vsel %vm1724, %v1772, %v1666
      %v1780 = vsel %vm1731, %v1774, %v1681
      %v1783 = vsel %vm1731, %v1776, %v1683
      %v1786 = vsel %vm1731, %v1778, %v1685
      %v1787 = vld [vmem:[%s1] sm:$0xf]
      %v1788 = vld [vmem:[%s2] sm:$0xff]
      %1790 = vset.pattern.permute.xlu0 0
      %1791 = vperm.xlu0 %1790, %v1788
      %v1792 = vpop.permute.xlu0 %1791
      %vm1794 = vcmask 293888
      %v1796 = vsel %vm1794, %v1787, 0
      %vm1798 = vcmask 1041408
      %v1799 = vsel %vm1798, %v1739, 0
      %v1801 = vsel %vm1798, %v1786, 0
      %1803 = vmatprep.subr.bf16.mxu0 0
      %1804 = vmatpush1.bf16.msra.mxu0 0
      %1805 = vmatprep.subr.bf16.mxu0 0
      %1806 = vmatpush1.bf16.msra.mxu0 0
      %1807 = vmatprep.subr.bf16.mxu0 0
      %1808 = vmatpush1.bf16.msra.mxu0 0
      %1809 = vmatprep.subr.bf16.mxu0 0
      %1810 = vmatpush1.bf16.msra.mxu0 0
      %1811 = vmatprep.subr.bf16.mxu0 0
      %1812 = vmatpush1.bf16.msra.mxu0 0
      %1813 = vmatprep.subr.bf16.mxu0 %v1801
      %1814 = vmatpush1.bf16.msra.mxu0 %v1799
      %1815 = vmatprep.subr.bf16.mxu0 %v1783
      %1816 = vmatpush1.bf16.msra.mxu0 %v1736
      %1817 = vmatprep.subr.bf16.mxu0 %v1780
      %1818 = vmatpush1.bf16.msra.mxu0 %v1733
      %1819 = vmatprep.subr.bf16.mxu0 0
      %1820 = vmatpush2.bf16.msra.mxu0 0
      %1821 = vmatprep.subr.bf16.mxu0 0
      %1822 = vmatpush2.bf16.msra.mxu0 0
      %1823 = vmatprep.subr.bf16.mxu0 0
      %1824 = vmatpush2.bf16.msra.mxu0 0
      %1825 = vmatprep.subr.bf16.mxu0 0
      %1826 = vmatpush2.bf16.msra.mxu0 0
      %1827 = vmatprep.subr.bf16.mxu0 0
      %1828 = vmatpush2.bf16.msra.mxu0 0
      %1829 = vmatprep.subr.bf16.mxu0 0
      %1830 = vmatpush2.bf16.msra.mxu0 0
      %1831 = vmatprep.subr.bf16.mxu0 0
      %1832 = vmatpush2.bf16.msra.mxu0 0
      %1833 = vmatprep.subr.bf16.mxu0 0
      %1834 = vmatpush2.bf16.msra.mxu0 0
      %1835 = vmatprep.mubr.bf16.mxu0 0
      %1836 = vmatmul.mubr.bf16.gmra.mxu0 %v1796
      %v1837 = vpop.f32.mrf.mxu0
      %v1838 = vadd.f32 %v1792, %v1837
      %v1839 = vpop.f32.mrf.mxu0
      %v1840 = vadd.f32 %v1792, %v1839
      %v1841 = vpop.f32.mrf.mxu0
      %v1842 = vpop.f32.mrf.mxu0
      %1843 = vdwg.mxu0
      %1844 = vst [vmem:[%s192] sm:$0xff] %v1838
      %1845 = vst [vmem:[%s192 + $0x8] sm:$0xff] %v1840
      %s1846 = smul.u32 2, %s19
      %p1847 = scmp.lt.s32.totalorder %s18, 1
      %s1848 = scalar_select %p1847, %s18, 1
      %p1849 = scmp.lt.s32.totalorder %s1846, 1
      %s1850 = scalar_select %p1849, %s1846, 1
      %s1851 = smul.addr %s1848, 2
      %s1852 = sadd.s32 %s1850, %s1851
      %s1853 = smul.addr %s1852, 8
      %s1854 = scalar_lea.vmem %s3, %s1853
      // Predicated region
      $region33: #{basic_conv2d.1} parent=31 // pred_check
        %p1855 = pneg %p114
      $region34: #{basic_conv2d.1} parent=31 // pred_check_branch
        %1857 = sbr.rel (%p1855) target = $region36
      $region35: #{basic_conv2d.1} parent=31 // pred_region
        %s1858 = smul.u32 2, %s19
      $region36: #{basic_conv2d.1} parent=31 // pred_fallthru
        _
    $region32: #{basic_conv2d.1} parent=5 // pred_fallthru
      _
    %p1859 = scmp.le.s32.totalorder 2, %s9
    // Predicated region
    $region37: #{basic_conv2d.1} parent=5 // pred_check
      %p1860 = pneg %p1859
    $region38: #{basic_conv2d.1} parent=5 // pred_check_branch
      %1862 = sbr.rel (%p1860) target = $region40
    $region39: #{basic_conv2d.1} parent=5 // pred_region
      %s1863 = ssub.s32 %s9, 2
      // Predicated region
      $region41: #{basic_conv2d.1} parent=39 // pred_check
        %p1864 = pneg %p120
      $region42: #{basic_conv2d.1} parent=39 // pred_check_branch
        %1866 = sbr.rel (%p1864) target = $region44
      $region43: #{basic_conv2d.1} parent=39 // pred_region
        %s1867 = smul.u32 2, %s21
        %p1868 = scmp.lt.s32.totalorder %s20, 1
        %s1869 = scalar_select %p1868, %s20, 1
        %p1870 = scmp.lt.s32.totalorder %s1867, 1
        %s1871 = scalar_select %p1870, %s1867, 1
        %s1872 = smul.addr %s1869, 2
        %s1873 = sadd.s32 %s1871, %s1872
        %s1874 = smul.addr %s1873, 8
        %s1875 = scalar_lea.vmem %s3, %s1874
      $region44: #{basic_conv2d.1} parent=39 // pred_fallthru
        _
    $region40: #{basic_conv2d.1} parent=5 // pred_fallthru
      _
  $region6: #{basic_conv2d.1} parent=0 // loop_footer
    %s13 = sadd.s32 1, %s9
  $region7: #{basic_conv2d.1} parent=0 // loop_footer_branch
    %8 = sbr.rel target = $region3
  $region8: #{basic_conv2d.1} parent=0 // loop_exit
    _

</llo_original>
